<compile_context>
chip_gen: v7x
topology: tpu7x:2x2x1
jax: 0.10.0
libtpu: 0.0.40
codegen_flags: <defaults>
</compile_context>

<pallas_src>
import functools

import numpy as np
import jax
import jax.numpy as jnp
from jax import lax
from jax.experimental import pallas as pl
from jax.experimental.pallas import tpu as pltpu


H = W = 16           # sizeX = sizeY
P = H * W            # 256 spatial positions -> lane axis inside the kernel
CPAD = 64            # hidden-layer channel padding (sublane axis)
K1 = 16              # layer-1 contraction: 9 taps of the 1-channel input, padded to 16
KH = 9 * CPAD        # hidden-layer contraction: 9 taps x 64 padded channels = 576
_OFFSETS = tuple((dy, dx) for dy in (-1, 0, 1) for dx in (-1, 0, 1))  # t = ky*3 + kx


def _resolve_roll_sign():
    """Resolve pltpu.roll's rotation direction once on-device with a tiny probe."""
    def probe(x_ref, o_ref):
        o_ref[...] = pltpu.roll(x_ref[...], 1, axis=1)

    x = jnp.tile(jnp.arange(128, dtype=jnp.float32)[None, :], (8, 1))
    out = np.asarray(
        pl.pallas_call(probe, out_shape=jax.ShapeDtypeStruct((8, 128), jnp.float32))(x))
    # jnp.roll convention: out[:, i] == x[:, i-1] -> out[0, 0] == 127.  Then
    # tap[p] = act[p + s] needs shift = (-s) % P, i.e. sign = -1.
    return -1 if int(out[0, 0]) == 127 else 1


def _fused_dqn_kernel(x1_ref, w1_ref, b1_ref, w2_ref, b2_ref, w3_ref, b3_ref,
                      w4_ref, b4_ref, w5_ref, b5_ref, o_ref, taps_ref, *, roll_sign):
    """All 5 conv3x3(pad=1)+ReLU layers for one image; activations VMEM-resident.

      x1_ref : (1, K1, P)  bf16  layer-1 im2col (9 taps of the 1-channel input, K-padded)
      wN_ref : (Cout_pad, K) bf16  weights packed as K = tap*CPAD + cin (transposed layout)
      bN_ref : (Cout_pad, 1) f32
      o_ref  : (1, 2, P)   f32   channel-major final activation (== NCHW flatten)
      taps_ref: (KH, P)    bf16  scratch: in-kernel im2col of the current activation
    """
    # Boundary-validity masks of the 9 (dy, dx) taps (shared by all hidden layers).
    col = lax.broadcasted_iota(jnp.int32, (1, P), 1)
    yy, xx = col // W, col % W
    masks = [(yy + dy >= 0) & (yy + dy < H) & (xx + dx >= 0) & (xx + dx < W)
             for dy, dx in _OFFSETS]

    def conv(w_ref, b_ref, rhs):
        acc = jnp.dot(w_ref[...], rhs, preferred_element_type=jnp.float32)  # MXU, f32 acc
        return jnp.maximum(acc + b_ref[...], 0.0)            # f32 bias + ReLU (v5e-safe)

    def build_taps(act):
        # act: (CPAD, P) f32.  Write the 9 shifted/masked copies (bf16) into taps_ref;
        # K index = tap*CPAD + channel, matching the packed weights.
        for t, (dy, dx) in enumerate(_OFFSETS):
            s = dy * W + dx
            if s == 0:
                tap = act
            else:
                tap = pltpu.roll(act, (roll_sign * s) % P, axis=1)   # XLU lane rotation
                tap = jnp.where(masks[t], tap, 0.0)                  # zero-padding mask
            taps_ref[pl.ds(t * CPAD, CPAD), :] = tap.astype(jnp.bfloat16)

    # Layer 1 (Cin=1): deep-K matmul straight off the prebuilt im2col input.
    act = conv(w1_ref, b1_ref, x1_ref[0])                    # (CPAD, P) f32
    # Layers 2-4: in-kernel im2col + one K=576 MXU matmul each.
    for w_ref, b_ref in ((w2_ref, b2_ref), (w3_ref, b3_ref), (w4_ref, b4_ref)):
        build_taps(act)
        act = conv(w_ref, b_ref, taps_ref[...])
    # Layer 5 (Cout=2): lane-dense (2, P) rows == torch.flatten(NCHW, 1) layout.
    build_taps(act)
    out = conv(w5_ref, b5_ref, taps_ref[...])                # (8, P); rows 2..7 are zero
    o_ref[0] = out[:2, :]


def _pack_w(w_hwio, cin_pad, cout_pad, k_pad=None):
    """(3,3,Cin,Cout) HWIO -> (Cout_pad, 9*Cin_pad[->k_pad]) bf16, K = tap*Cin_pad + cin."""
    kh, kw, cin, cout = w_hwio.shape
    w = jnp.pad(w_hwio.reshape(kh * kw, cin, cout), ((0, 0), (0, cin_pad - cin), (0, 0)))
    w = jnp.transpose(w, (2, 0, 1)).reshape(cout, kh * kw * cin_pad)
    if k_pad is not None and k_pad > w.shape[1]:
        w = jnp.pad(w, ((0, 0), (0, k_pad - w.shape[1])))
    return jnp.pad(w, ((0, cout_pad - cout), (0, 0))).astype(jnp.bfloat16)


def _pack_b(b, cout_pad):
    return jnp.pad(b, (0, cout_pad - b.shape[0])).reshape(cout_pad, 1).astype(jnp.float32)


def _im2col_input(x_nchw):
    """(N,1,H,W) -> (N, K1, P) bf16: the 9 zero-padded taps of the input, tap-major."""
    n = x_nchw.shape[0]
    xp = jnp.pad(x_nchw[:, 0], ((0, 0), (1, 1), (1, 1)))               # (N, H+2, W+2)
    taps = jnp.stack([xp[:, ky:ky + H, kx:kx + W].reshape(n, P)
                      for ky in range(3) for kx in range(3)], axis=1)  # (N, 9, P)
    return jnp.pad(taps, ((0, 0), (0, K1 - 9), (0, 0))).astype(jnp.bfloat16)


def make_dqn_forward(roll_sign):
    kernel = functools.partial(_fused_dqn_kernel, roll_sign=roll_sign)

    @jax.jit
    def dqn_forward(x_nchw, params):
        n = x_nchw.shape[0]
        (w1, b1), (w2, b2), (w3, b3), (w4, b4), (w5, b5) = params
        args = (
            _im2col_input(x_nchw),
            _pack_w(w1, 1, CPAD, k_pad=K1), _pack_b(b1, CPAD),
            _pack_w(w2, CPAD, CPAD), _pack_b(b2, CPAD),
            _pack_w(w3, CPAD, CPAD), _pack_b(b3, CPAD),
            _pack_w(w4, CPAD, CPAD), _pack_b(b4, CPAD),
            _pack_w(w5, CPAD, 8), _pack_b(b5, 8),
        )

        def resident(a):           # full-array block, stays VMEM-resident across steps
            return pl.BlockSpec(a.shape, lambda i: (0,) * a.ndim)

        out = pl.pallas_call(
            kernel,
            out_shape=jax.ShapeDtypeStruct((n, 2, P), jnp.float32),
            grid=(n,),
            in_specs=[pl.BlockSpec((1, K1, P), lambda i: (i, 0, 0))]
                     + [resident(a) for a in args[1:]],
            out_specs=pl.BlockSpec((1, 2, P), lambda i: (i, 0, 0)),
            scratch_shapes=[pltpu.VMEM((KH, P), jnp.bfloat16)],
            compiler_params=pltpu.CompilerParams(
                dimension_semantics=("parallel",)),     # both TensorCores on v7x
        )(*args)
        # Row c, lane p of image n is conv5[n, c, y, x] -> reshape == torch.flatten(x, 1).
        return out.reshape(n, 2 * P)

    return dqn_forward


def init_params(key):
    """Deterministic synthetic init mirroring the DQN __init__ shapes (HWIO + bias)."""
    channels = [(1, 32), (32, 64), (64, 64), (64, 64), (64, 2)]
    params = []
    for i, (cin, cout) in enumerate(channels):
        kw, kb = jax.random.split(jax.random.fold_in(key, i))
        bound = 1.0 / float(np.sqrt(cin * 9))
        w = jax.random.uniform(kw, (3, 3, cin, cout), jnp.float32, -bound, bound)
        b = jax.random.uniform(kb, (cout,), jnp.float32, -bound, bound)
        params.append((w, b))
    return params


def dqn_reference(x_nchw, params):
    """Pure-JAX f32 reference of DQN.forward used to validate the fused kernel."""
    x = x_nchw.astype(jnp.float32)
    for w, b in params:
        x = lax.conv_general_dilated(
            x, jnp.transpose(w, (3, 2, 0, 1)), (1, 1), ((1, 1), (1, 1)),
            dimension_numbers=("NCHW", "OIHW", "NCHW"))
        x = jnp.maximum(x + b.reshape(1, -1, 1, 1), 0.0)
    return x.reshape(x.shape[0], -1)


if __name__ == "__main__":
    roll_sign = _resolve_roll_sign()
    dqn_forward = make_dqn_forward(roll_sign)

    key = jax.random.PRNGKey(0)
    params = init_params(key)
    x = jax.random.normal(jax.random.fold_in(key, 100), (2, 1, H, W), jnp.float32)

    out = dqn_forward(x, params)
    jax.block_until_ready(out)
    assert out.shape == (2, 2 * H * W), out.shape

    ref = dqn_reference(x, params)
    err = float(jnp.max(jnp.abs(out - ref)))
    scale = max(float(jnp.max(jnp.abs(ref))), 1.0)
    assert err <= 0.05 * scale, f"kernel mismatch: max|err|={err:.4f}, scale={scale:.4f}"

    print("KERNEL_OK")
</pallas_src>

<mosaic_0001>
module attributes {stable_mosaic.version = 11 : i64} {
  func.func @probe(%arg0: memref<8x128xf32, #tpu.memory_space<vmem>>, %arg1: memref<8x128xf32, #tpu.memory_space<vmem>>) attributes {dimension_semantics = [], scalar_prefetch = 0 : i64, scratch_operands = 0 : i64, tpu.core_type = #tpu.core_type<tc>} {
    %c0 = arith.constant 0 : index
    %c0_0 = arith.constant 0 : index
    %0 = vector.load %arg0[%c0, %c0_0] : memref<8x128xf32, #tpu.memory_space<vmem>>, vector<8x128xf32>
    %c1_i32 = arith.constant 1 : i32
    %1 = tpu.dynamic_rotate %0 by %c1_i32 dim 1 : vector<8x128xf32>, i32 -> vector<8x128xf32>
    %c0_1 = arith.constant 0 : index
    %c0_2 = arith.constant 0 : index
    %2 = vector.load %arg1[%c0_1, %c0_2] : memref<8x128xf32, #tpu.memory_space<vmem>>, vector<8x128xf32>
    tpu.vector_store %arg1[%c0_1, %c0_2], %1 {strides = array<i32>} : memref<8x128xf32, #tpu.memory_space<vmem>>, vector<8x128xf32>,
    return
  }
}

</mosaic_0001>

<llo_original>
// kernel: tpu_custom_call.1
$region0: #{tpu_custom_call.1}
  #allocation0 [shape = 'u32[]', space=smem, size = 0x4, offset = 0x4, fixed_abs, tag = 'smem constant byte address 0x4 - core index']
  #allocation1 [shape = 'u32[144,128]{1,0:T(1,128)}', space=vmem, size = 0x12000, scoped, tag = 'internal scratch']
  %s0 = inlined_call_operand.hbm [shape: f32[8,128], index: 0, kind: input, shape index: {}]
  %s1 = inlined_call_operand.hbm [shape: f32[8,128], index: 1, kind: output, shape index: {}]
  %s2 = sld [smem:[#allocation0]]
  $region18: #{tpu_custom_call.1} parent=0
    _
  %s4 = ssub.s32 1, %s2
  %s5 = scalar_select 0, %s4, %s2
  $region1: #{tpu_custom_call.1} parent=0
    #allocation2 [shape = 'u8[4096]{0}', space=vmem, size = 0x1000, scoped, tag = 'input window, operand 0, single buffered']
    #allocation3 [shape = 's32[1]{0}', space=sflag, size = 0x4, scoped, tag = 'scoped memory for tpu_custom_call.1']
    #allocation4 [shape = 's32[1]{0}', space=sflag, size = 0x4, scoped, tag = 'scoped memory for tpu_custom_call.1']
    #allocation5 [shape = 'u8[4096]{0}', space=vmem, size = 0x1000, scoped, tag = 'output window, operand 0, single buffered']
    %6 = vsyncpa [#allocation3], 0
    %7 = vsyncpa [#allocation4], 0
    // Predicated region
    $region2: #{tpu_custom_call.1} parent=1 // pred_check
      _
    $region3: #{tpu_custom_call.1} parent=1 // pred_check_branch
      %9 = sbr.rel (0) target = $region5
    $region4: #{tpu_custom_call.1} parent=1 // pred_region
      %s11 = ssub.s32 128, 128
      %12 = vsyncadd [#allocation3], %s11
      %s14 = sshll.u32 [#allocation2], 4
      %s15 = int_to_ptr.vmem [resolvable:$true] %s14
      %17 = dma.hbm_to_vmem [thread:$0]  %s0, 128, %s15, [#allocation3]
    $region5: #{tpu_custom_call.1} parent=1 // pred_fallthru
      _
    // Predicated region
    $region6: #{tpu_custom_call.1} parent=1 // pred_check
      _
    $region7: #{tpu_custom_call.1} parent=1 // pred_check_branch
      %19 = sbr.rel (0) target = $region9
    $region8: #{tpu_custom_call.1} parent=1 // pred_region
      %20 = dma.done [#allocation3], 128
    $region9: #{tpu_custom_call.1} parent=1 // pred_fallthru
      _
    %v21 = vld [vmem:[#allocation2] sm:$0xff]
    %22 = vrot.lane.b32.xlu0 %v21, 1
    %v23 = vpop.permute.xlu0 %22
    %24 = vst [vmem:[#allocation5] sm:$0xff] %v23
    // Predicated region
    $region10: #{tpu_custom_call.1} parent=1 // pred_check
      _
    $region11: #{tpu_custom_call.1} parent=1 // pred_check_branch
      %26 = sbr.rel (0) target = $region13
    $region12: #{tpu_custom_call.1} parent=1 // pred_region
      %s28 = ssub.s32 128, 128
      %29 = vsyncadd [#allocation4], %s28
      %s31 = sshll.u32 [#allocation5], 4
      %s32 = int_to_ptr.vmem [resolvable:$true] %s31
      %34 = dma.vmem_to_hbm [thread:$0]  %s32, 128, %s1, [#allocation4]
    $region13: #{tpu_custom_call.1} parent=1 // pred_fallthru
      _
    // Predicated region
    $region14: #{tpu_custom_call.1} parent=1 // pred_check
      _
    $region15: #{tpu_custom_call.1} parent=1 // pred_check_branch
      %36 = sbr.rel (0) target = $region17
    $region16: #{tpu_custom_call.1} parent=1 // pred_region
      %37 = dma.done [#allocation4], 128
    $region17: #{tpu_custom_call.1} parent=1 // pred_fallthru
      _
    %38 = vsyncpa [#allocation3], 1
    %39 = vsyncpa [#allocation4], 1

</llo_original>
